<compile_context>
chip_gen: v7x
topology: tpu7x:2x2x1
jax: 0.10.0
libtpu: 0.0.40
codegen_flags: <defaults>
</compile_context>

<pallas_src>
import functools
import math

import jax
import jax.numpy as jnp
from jax.experimental import pallas as pl
from jax.experimental.pallas import tpu as pltpu

LN_EPS = 1e-5  # torch.nn.LayerNorm default


def _layernorm(x, w, b):
    # x: (R, C); normalize over the channel (last) dim, affine w/b of shape (1, C)
    mu = jnp.mean(x, axis=-1, keepdims=True)
    xc = x - mu
    var = jnp.mean(xc * xc, axis=-1, keepdims=True)
    inv = jax.lax.rsqrt(var + LN_EPS)
    return xc * inv * w + b


def _gelu(x, approximate):
    if approximate:
        # tanh approximation -> EUP slot (VALU is the saturating unit here).
        # Deviation from torch.nn.GELU() (exact erf) is < ~1e-3 absolute.
        c = math.sqrt(2.0 / math.pi)
        return 0.5 * x * (1.0 + jnp.tanh(c * (x + 0.044715 * (x * x * x))))
    return 0.5 * x * (1.0 + jax.lax.erf(x * (1.0 / math.sqrt(2.0))))


def mixer_block_kernel(
    x_ref,        # (BB*T, C)  packed batch block, f32
    ln_w_ref,     # (1, C)
    ln_b_ref,     # (1, C)
    t_w1_ref,     # (S*H_T, T)   fused temporal fc1 (block-structured), bf16
    t_b1_ref,     # (S*H_T, 1)   f32
    t_w2_ref,     # (T, S*H_T)   fused temporal fc2 (block-structured), bf16
    t_b2_ref,     # (T, 1)       f32
    c_w1_ref,     # (C, H_C)     pre-transposed channel fc1, bf16
    c_b1_ref,     # (1, H_C)
    c_w2_ref,     # (H_C, C)     pre-transposed channel fc2, bf16
    c_b2_ref,     # (1, C)
    o_ref,        # (BB*T, C)
    *, block_b, tokens, approx_gelu,
):
    T = tokens
    x = x_ref[...]                          # (BB*T, C) f32
    ln_w = ln_w_ref[...]
    ln_b = ln_b_ref[...]

    # ---- y = LayerNorm(x) over the whole packed block ----
    y = _layernorm(x, ln_w, ln_b)
    # Single cast for all per-batch temporal matmuls (hoisted out of the loop).
    y_mx = y.astype(t_w1_ref.dtype)

    # ---- factorized temporal (token) mixing ----
    # All S per-phase MLPs are fused into two block-structured weights, so each
    # batch element is exactly two MXU matmuls; no strided slicing, no stack /
    # reshape interleave.  Channels stay on the lane dim (left-multiplication
    # realizes the PyTorch transpose(1, 2)).
    w1 = t_w1_ref[...]
    b1 = t_b1_ref[...]
    w2 = t_w2_ref[...]
    b2 = t_b2_ref[...]
    outs = []
    for b in range(block_b):                # small static loop over packed batches
        yb = y_mx[b * T:(b + 1) * T, :]     # static, sublane-aligned slice
        h = jnp.dot(w1, yb,
                    preferred_element_type=jnp.float32) + b1      # (S*H_T, C)
        h = _gelu(h, approx_gelu)
        o = jnp.dot(w2, h.astype(w2.dtype),
                    preferred_element_type=jnp.float32) + b2      # (T, C)
        outs.append(o)
    y_tok = outs[0] if block_b == 1 else jnp.concatenate(outs, axis=0)  # (BB*T, C)

    # ---- channel mixing with residuals ----
    y1 = y_tok + x                           # y += x ; res = y
    y2 = _layernorm(y1, ln_w, ln_b)          # shared LayerNorm (same nn.LayerNorm)
    cw1 = c_w1_ref[...]
    cw2 = c_w2_ref[...]
    h = jnp.dot(y2.astype(cw1.dtype), cw1,
                preferred_element_type=jnp.float32) + c_b1_ref[...]     # (BB*T, H_C)
    h = _gelu(h, approx_gelu)
    cm = jnp.dot(h.astype(cw2.dtype), cw2,
                 preferred_element_type=jnp.float32) + c_b2_ref[...]    # (BB*T, C)
    o_ref[...] = (y1 + cm).astype(o_ref.dtype)


def _choose_block_b(B, T, C, max_rows=1024):
    """Pick how many batch elements to pack per grid step.

    Prefers (a) >= 2 grid steps when B allows (v7x has 2 TensorCores per chip),
    (b) sublane-aligned blocks (rows % 8 == 0), (c) a bounded VMEM block
    (~8 intermediates of rows*C f32 must fit well under the scoped limit).
    """
    # Keep roughly rows*C*4*8 bytes of live block data under ~16 MiB.
    vmem_rows = max(64, (16 << 20) // max(1, 8 * 4 * C))
    max_rows = min(max_rows, vmem_rows)
    best = 1
    for bb in range(1, B + 1):
        if B % bb != 0:
            continue
        if B >= 2 and B // bb < 2:
            continue
        rows = bb * T
        if rows % 8 != 0 and rows != B * T:
            continue
        if rows > max_rows:
            continue
        best = max(best, bb)
    if (best * T) % 8 != 0:
        best = B       # fall back to one full-array block (exempt from (8,128) rule)
    return best


def mixer_block(x, p, sampling, *, block_b=None, mxu_dtype=jnp.bfloat16,
                approx_gelu=True):
    B, T, C = x.shape
    assert T % sampling == 0, "tokens_dim must be divisible by sampling"
    S = sampling
    H_T = p["t_fc1_w"].shape[1]

    # ---- fuse the S per-phase temporal MLPs into block-structured weights ----
    # W1_all[idx*H_T + h, j*S + idx] = t_fc1_w[idx, h, j]
    # W2_all[j*S + idx, idx*H_T + h] = t_fc2_w[idx, j, h]
    eye = jnp.eye(S, dtype=p["t_fc1_w"].dtype)
    w1_all = jnp.einsum("shj,sk->shjk", p["t_fc1_w"], eye).reshape(S * H_T, T)
    b1_all = p["t_fc1_b"].reshape(S * H_T, 1)
    w2_all = jnp.einsum("sjh,sk->jksh", p["t_fc2_w"], eye).reshape(T, S * H_T)
    b2_all = jnp.transpose(p["t_fc2_b"][:, :, 0]).reshape(T, 1)

    # MXU operands in bf16 (f32 accumulation); biases / LN params stay f32.
    w1_all = w1_all.astype(mxu_dtype)
    w2_all = w2_all.astype(mxu_dtype)
    c_w1t = jnp.transpose(p["c_fc1_w"]).astype(mxu_dtype)   # (C, H_C)
    c_w2t = jnp.transpose(p["c_fc2_w"]).astype(mxu_dtype)   # (H_C, C)

    if block_b is None:
        block_b = _choose_block_b(B, T, C)
    assert B % block_b == 0
    rows = block_b * T

    xf = x.reshape(B * T, C)                 # 2-D, lane-dense layout for the kernel
    args = (
        xf,
        p["ln_w"], p["ln_b"],
        w1_all, b1_all, w2_all, b2_all,
        c_w1t, p["c_fc1_b"], c_w2t, p["c_fc2_b"],
    )

    def rep(a):
        # full-array block, replicated across the batch grid (all weights are 2-D)
        return pl.BlockSpec(a.shape, lambda i: (0, 0))

    kernel = functools.partial(
        mixer_block_kernel, block_b=block_b, tokens=T, approx_gelu=approx_gelu)

    out = pl.pallas_call(
        kernel,
        out_shape=jax.ShapeDtypeStruct((B * T, C), x.dtype),
        grid=(B // block_b,),
        in_specs=[pl.BlockSpec((rows, C), lambda i: (i, 0))]
                 + [rep(a) for a in args[1:]],
        out_specs=pl.BlockSpec((rows, C), lambda i: (i, 0)),
        compiler_params=pltpu.CompilerParams(
            dimension_semantics=("parallel",),
            vmem_limit_bytes=48 * 1024 * 1024,   # raise default, stay < v7x 64 MiB
        ),
    )(*args)
    return out.reshape(B, T, C)


def mixer_block_reference(x, p, sampling):
    """Pure-JAX mirror of the PyTorch MixerBlock forward (fac_T, fac_C, norm all on)."""
    def ln(v):
        mu = v.mean(-1, keepdims=True)
        var = ((v - mu) ** 2).mean(-1, keepdims=True)
        return (v - mu) / jnp.sqrt(var + LN_EPS) * p["ln_w"][0] + p["ln_b"][0]

    def gelu(v):  # exact erf == torch.nn.GELU() default
        return 0.5 * v * (1.0 + jax.lax.erf(v / jnp.sqrt(2.0)))

    y = ln(x)
    yt = jnp.swapaxes(y, 1, 2)                     # (B, C, T)
    out = jnp.zeros_like(yt)
    for idx in range(sampling):
        sub = yt[:, :, idx::sampling]              # (B, C, Ts)
        h = gelu(sub @ p["t_fc1_w"][idx].T + p["t_fc1_b"][idx][:, 0])
        o = h @ p["t_fc2_w"][idx].T + p["t_fc2_b"][idx][:, 0]
        out = out.at[:, :, idx::sampling].set(o)
    y = jnp.swapaxes(out, 1, 2)                    # (B, T, C)
    y = y + x
    res = y
    y2 = ln(y)
    h = gelu(y2 @ p["c_fc1_w"].T + p["c_fc1_b"][0])
    return res + h @ p["c_fc2_w"].T + p["c_fc2_b"][0]


if __name__ == "__main__":
    # small shapes: batch=4 (so batch-packing + a 2-step parallel grid are both
    # exercised), tokens_dim=16, channels_dim=32, tokens_hidden_dim=8,
    # channels_hidden_dim=16 (< channels_dim), sampling=2
    B, T, C = 4, 16, 32
    S = 2
    Ts = T // S
    H_T = 8
    H_C = 16

    key = jax.random.PRNGKey(0)
    ks = jax.random.split(key, 12)
    x = jax.random.normal(ks[0], (B, T, C), jnp.float32)

    params = {
        "ln_w": 1.0 + 0.1 * jax.random.normal(ks[1], (1, C), jnp.float32),
        "ln_b": 0.1 * jax.random.normal(ks[2], (1, C), jnp.float32),
        # temporal factorized MLPs (one per sampling phase), PyTorch Linear layout [out, in]
        "t_fc1_w": 0.1 * jax.random.normal(ks[3], (S, H_T, Ts), jnp.float32),
        "t_fc1_b": 0.1 * jax.random.normal(ks[4], (S, H_T, 1), jnp.float32),
        "t_fc2_w": 0.1 * jax.random.normal(ks[5], (S, Ts, H_T), jnp.float32),
        "t_fc2_b": 0.1 * jax.random.normal(ks[6], (S, Ts, 1), jnp.float32),
        # channel mixing MLP
        "c_fc1_w": 0.1 * jax.random.normal(ks[7], (H_C, C), jnp.float32),
        "c_fc1_b": 0.1 * jax.random.normal(ks[8], (1, H_C), jnp.float32),
        "c_fc2_w": 0.1 * jax.random.normal(ks[9], (C, H_C), jnp.float32),
        "c_fc2_b": 0.1 * jax.random.normal(ks[10], (1, C), jnp.float32),
    }

    out = mixer_block(x, params, S)
    out = jax.block_until_ready(out)

    ref = mixer_block_reference(x, params, S)
    err = float(jnp.max(jnp.abs(out - ref)))
    assert out.shape == (B, T, C)
    # tolerance absorbs bf16 MXU operands + tanh-GELU approximation
    assert err < 2e-2, f"max abs error {err}"
    print("KERNEL_OK")
</pallas_src>

<mosaic_0001>
module attributes {stable_mosaic.version = 11 : i64} {
  func.func @mixer_block_kernel(%arg0: i32, %arg1: memref<32x32xf32, #tpu.memory_space<vmem>>, %arg2: memref<1x32xf32, #tpu.memory_space<vmem>>, %arg3: memref<1x32xf32, #tpu.memory_space<vmem>>, %arg4: memref<16x16xbf16, #tpu.memory_space<vmem>>, %arg5: memref<16x1xf32, #tpu.memory_space<vmem>>, %arg6: memref<16x16xbf16, #tpu.memory_space<vmem>>, %arg7: memref<16x1xf32, #tpu.memory_space<vmem>>, %arg8: memref<32x16xbf16, #tpu.memory_space<vmem>>, %arg9: memref<1x16xf32, #tpu.memory_space<vmem>>, %arg10: memref<16x32xbf16, #tpu.memory_space<vmem>>, %arg11: memref<1x32xf32, #tpu.memory_space<vmem>>, %arg12: memref<32x32xf32, #tpu.memory_space<vmem>>) attributes {dimension_semantics = [#tpu.dimension_semantics<parallel>], iteration_bounds = array<i64: 2>, scalar_prefetch = 0 : i64, scratch_operands = 0 : i64, tpu.core_type = #tpu.core_type<tc>, window_params = [{transform_indices = @transform_0, window_bounds = array<i64: 32, 32>}, {pipeline_mode = #tpu.pipeline_mode<synchronous>, transform_indices = @transform_1, window_bounds = array<i64: 1, 32>}, {pipeline_mode = #tpu.pipeline_mode<synchronous>, transform_indices = @transform_2, window_bounds = array<i64: 1, 32>}, {pipeline_mode = #tpu.pipeline_mode<synchronous>, transform_indices = @transform_3, window_bounds = array<i64: 16, 16>}, {pipeline_mode = #tpu.pipeline_mode<synchronous>, transform_indices = @transform_4, window_bounds = array<i64: 16, 1>}, {pipeline_mode = #tpu.pipeline_mode<synchronous>, transform_indices = @transform_5, window_bounds = array<i64: 16, 16>}, {pipeline_mode = #tpu.pipeline_mode<synchronous>, transform_indices = @transform_6, window_bounds = array<i64: 16, 1>}, {pipeline_mode = #tpu.pipeline_mode<synchronous>, transform_indices = @transform_7, window_bounds = array<i64: 32, 16>}, {pipeline_mode = #tpu.pipeline_mode<synchronous>, transform_indices = @transform_8, window_bounds = array<i64: 1, 16>}, {pipeline_mode = #tpu.pipeline_mode<synchronous>, transform_indices = @transform_9, window_bounds = array<i64: 16, 32>}, {pipeline_mode = #tpu.pipeline_mode<synchronous>, transform_indices = @transform_10, window_bounds = array<i64: 1, 32>}, {transform_indices = @transform_11, window_bounds = array<i64: 32, 32>}]} {
    %c0 = arith.constant 0 : index
    %c0_0 = arith.constant 0 : index
    %0 = vector.load %arg1[%c0, %c0_0] : memref<32x32xf32, #tpu.memory_space<vmem>>, vector<32x32xf32>
    %c0_1 = arith.constant 0 : index
    %c0_2 = arith.constant 0 : index
    %1 = vector.load %arg2[%c0_1, %c0_2] : memref<1x32xf32, #tpu.memory_space<vmem>>, vector<1x32xf32>
    %c0_3 = arith.constant 0 : index
    %c0_4 = arith.constant 0 : index
    %2 = vector.load %arg3[%c0_3, %c0_4] : memref<1x32xf32, #tpu.memory_space<vmem>>, vector<1x32xf32>
    %cst = arith.constant dense<0.000000e+00> : vector<32xf32>
    %3 = vector.multi_reduction <add>, %0, %cst [1] : vector<32x32xf32> to vector<32xf32>
    %4 = vector.shape_cast %3 : vector<32xf32> to vector<32x1xf32>
    %cst_5 = arith.constant 3.200000e+01 : f32
    %5 = vector.broadcast %cst_5 : f32 to vector<32x1xf32>
    %6 = arith.divf %4, %5 : vector<32x1xf32>
    %7 = vector.broadcast %6 : vector<32x1xf32> to vector<32x32xf32>
    %8 = arith.subf %0, %7 : vector<32x32xf32>
    %9 = arith.mulf %8, %8 : vector<32x32xf32>
    %cst_6 = arith.constant dense<0.000000e+00> : vector<32xf32>
    %10 = vector.multi_reduction <add>, %9, %cst_6 [1] : vector<32x32xf32> to vector<32xf32>
    %11 = vector.shape_cast %10 : vector<32xf32> to vector<32x1xf32>
    %cst_7 = arith.constant 3.200000e+01 : f32
    %12 = vector.broadcast %cst_7 : f32 to vector<32x1xf32>
    %13 = arith.divf %11, %12 : vector<32x1xf32>
    %cst_8 = arith.constant 9.99999974E-6 : f32
    %14 = vector.broadcast %cst_8 : f32 to vector<32x1xf32>
    %15 = arith.addf %13, %14 : vector<32x1xf32>
    %16 = math.rsqrt %15 : vector<32x1xf32>
    %17 = vector.broadcast %16 : vector<32x1xf32> to vector<32x32xf32>
    %18 = arith.mulf %8, %17 : vector<32x32xf32>
    %19 = vector.broadcast %1 : vector<1x32xf32> to vector<32x32xf32>
    %20 = arith.mulf %18, %19 : vector<32x32xf32>
    %21 = vector.broadcast %2 : vector<1x32xf32> to vector<32x32xf32>
    %22 = arith.addf %20, %21 : vector<32x32xf32>
    %23 = arith.truncf %22 : vector<32x32xf32> to vector<32x32xbf16>
    %c0_9 = arith.constant 0 : index
    %c0_10 = arith.constant 0 : index
    %24 = vector.load %arg4[%c0_9, %c0_10] : memref<16x16xbf16, #tpu.memory_space<vmem>>, vector<16x16xbf16>
    %c0_11 = arith.constant 0 : index
    %c0_12 = arith.constant 0 : index
    %25 = vector.load %arg5[%c0_11, %c0_12] : memref<16x1xf32, #tpu.memory_space<vmem>>, vector<16x1xf32>
    %c0_13 = arith.constant 0 : index
    %c0_14 = arith.constant 0 : index
    %26 = vector.load %arg6[%c0_13, %c0_14] : memref<16x16xbf16, #tpu.memory_space<vmem>>, vector<16x16xbf16>
    %c0_15 = arith.constant 0 : index
    %c0_16 = arith.constant 0 : index
    %27 = vector.load %arg7[%c0_15, %c0_16] : memref<16x1xf32, #tpu.memory_space<vmem>>, vector<16x1xf32>
    %28 = vector.extract_strided_slice %23 {offsets = [0, 0], sizes = [16, 32], strides = [1, 1]} : vector<32x32xbf16> to vector<16x32xbf16>
    %cst_17 = arith.constant dense<0.000000e+00> : vector<16x32xf32>
    %29 = tpu.matmul %24, %28, %cst_17 {dimension_numbers = #tpu.dot_dimension_numbers<[1], [0], [0], [1], [0, 0, 1, 1], [], []>} : vector<16x16xbf16>, vector<16x32xbf16>, vector<16x32xf32> -> vector<16x32xf32>
    %30 = vector.broadcast %25 : vector<16x1xf32> to vector<16x32xf32>
    %31 = arith.addf %29, %30 : vector<16x32xf32>
    %cst_18 = arith.constant 5.000000e-01 : f32
    %32 = vector.broadcast %cst_18 : f32 to vector<16x32xf32>
    %33 = arith.mulf %32, %31 : vector<16x32xf32>
    %34 = arith.mulf %31, %31 : vector<16x32xf32>
    %35 = arith.mulf %34, %31 : vector<16x32xf32>
    %cst_19 = arith.constant 4.471500e-02 : f32
    %36 = vector.broadcast %cst_19 : f32 to vector<16x32xf32>
    %37 = arith.mulf %36, %35 : vector<16x32xf32>
    %38 = arith.addf %31, %37 : vector<16x32xf32>
    %cst_20 = arith.constant 0.797884583 : f32
    %39 = vector.broadcast %cst_20 : f32 to vector<16x32xf32>
    %40 = arith.mulf %39, %38 : vector<16x32xf32>
    %41 = math.tanh %40 : vector<16x32xf32>
    %cst_21 = arith.constant 1.000000e+00 : f32
    %42 = vector.broadcast %cst_21 : f32 to vector<16x32xf32>
    %43 = arith.addf %42, %41 : vector<16x32xf32>
    %44 = arith.mulf %33, %43 : vector<16x32xf32>
    %45 = arith.truncf %44 : vector<16x32xf32> to vector<16x32xbf16>
    %cst_22 = arith.constant dense<0.000000e+00> : vector<16x32xf32>
    %46 = tpu.matmul %26, %45, %cst_22 {dimension_numbers = #tpu.dot_dimension_numbers<[1], [0], [0], [1], [0, 0, 1, 1], [], []>} : vector<16x16xbf16>, vector<16x32xbf16>, vector<16x32xf32> -> vector<16x32xf32>
    %47 = vector.broadcast %27 : vector<16x1xf32> to vector<16x32xf32>
    %48 = arith.addf %46, %47 : vector<16x32xf32>
    %49 = vector.extract_strided_slice %23 {offsets = [16, 0], sizes = [16, 32], strides = [1, 1]} : vector<32x32xbf16> to vector<16x32xbf16>
    %cst_23 = arith.constant dense<0.000000e+00> : vector<16x32xf32>
    %50 = tpu.matmul %24, %49, %cst_23 {dimension_numbers = #tpu.dot_dimension_numbers<[1], [0], [0], [1], [0, 0, 1, 1], [], []>} : vector<16x16xbf16>, vector<16x32xbf16>, vector<16x32xf32> -> vector<16x32xf32>
    %51 = vector.broadcast %25 : vector<16x1xf32> to vector<16x32xf32>
    %52 = arith.addf %50, %51 : vector<16x32xf32>
    %cst_24 = arith.constant 5.000000e-01 : f32
    %53 = vector.broadcast %cst_24 : f32 to vector<16x32xf32>
    %54 = arith.mulf %53, %52 : vector<16x32xf32>
    %55 = arith.mulf %52, %52 : vector<16x32xf32>
    %56 = arith.mulf %55, %52 : vector<16x32xf32>
    %cst_25 = arith.constant 4.471500e-02 : f32
    %57 = vector.broadcast %cst_25 : f32 to vector<16x32xf32>
    %58 = arith.mulf %57, %56 : vector<16x32xf32>
    %59 = arith.addf %52, %58 : vector<16x32xf32>
    %cst_26 = arith.constant 0.797884583 : f32
    %60 = vector.broadcast %cst_26 : f32 to vector<16x32xf32>
    %61 = arith.mulf %60, %59 : vector<16x32xf32>
    %62 = math.tanh %61 : vector<16x32xf32>
    %cst_27 = arith.constant 1.000000e+00 : f32
    %63 = vector.broadcast %cst_27 : f32 to vector<16x32xf32>
    %64 = arith.addf %63, %62 : vector<16x32xf32>
    %65 = arith.mulf %54, %64 : vector<16x32xf32>
    %66 = arith.truncf %65 : vector<16x32xf32> to vector<16x32xbf16>
    %cst_28 = arith.constant dense<0.000000e+00> : vector<16x32xf32>
    %67 = tpu.matmul %26, %66, %cst_28 {dimension_numbers = #tpu.dot_dimension_numbers<[1], [0], [0], [1], [0, 0, 1, 1], [], []>} : vector<16x16xbf16>, vector<16x32xbf16>, vector<16x32xf32> -> vector<16x32xf32>
    %68 = vector.broadcast %27 : vector<16x1xf32> to vector<16x32xf32>
    %69 = arith.addf %67, %68 : vector<16x32xf32>
    %70 = tpu.concatenate %48, %69 in 0 : vector<16x32xf32>, vector<16x32xf32> -> vector<32x32xf32>
    %71 = arith.addf %70, %0 : vector<32x32xf32>
    %cst_29 = arith.constant dense<0.000000e+00> : vector<32xf32>
    %72 = vector.multi_reduction <add>, %71, %cst_29 [1] : vector<32x32xf32> to vector<32xf32>
    %73 = vector.shape_cast %72 : vector<32xf32> to vector<32x1xf32>
    %cst_30 = arith.constant 3.200000e+01 : f32
    %74 = vector.broadcast %cst_30 : f32 to vector<32x1xf32>
    %75 = arith.divf %73, %74 : vector<32x1xf32>
    %76 = vector.broadcast %75 : vector<32x1xf32> to vector<32x32xf32>
    %77 = arith.subf %71, %76 : vector<32x32xf32>
    %78 = arith.mulf %77, %77 : vector<32x32xf32>
    %cst_31 = arith.constant dense<0.000000e+00> : vector<32xf32>
    %79 = vector.multi_reduction <add>, %78, %cst_31 [1] : vector<32x32xf32> to vector<32xf32>
    %80 = vector.shape_cast %79 : vector<32xf32> to vector<32x1xf32>
    %cst_32 = arith.constant 3.200000e+01 : f32
    %81 = vector.broadcast %cst_32 : f32 to vector<32x1xf32>
    %82 = arith.divf %80, %81 : vector<32x1xf32>
    %cst_33 = arith.constant 9.99999974E-6 : f32
    %83 = vector.broadcast %cst_33 : f32 to vector<32x1xf32>
    %84 = arith.addf %82, %83 : vector<32x1xf32>
    %85 = math.rsqrt %84 : vector<32x1xf32>
    %86 = vector.broadcast %85 : vector<32x1xf32> to vector<32x32xf32>
    %87 = arith.mulf %77, %86 : vector<32x32xf32>
    %88 = vector.broadcast %1 : vector<1x32xf32> to vector<32x32xf32>
    %89 = arith.mulf %87, %88 : vector<32x32xf32>
    %90 = vector.broadcast %2 : vector<1x32xf32> to vector<32x32xf32>
    %91 = arith.addf %89, %90 : vector<32x32xf32>
    %c0_34 = arith.constant 0 : index
    %c0_35 = arith.constant 0 : index
    %92 = vector.load %arg8[%c0_34, %c0_35] : memref<32x16xbf16, #tpu.memory_space<vmem>>, vector<32x16xbf16>
    %c0_36 = arith.constant 0 : index
    %c0_37 = arith.constant 0 : index
    %93 = vector.load %arg10[%c0_36, %c0_37] : memref<16x32xbf16, #tpu.memory_space<vmem>>, vector<16x32xbf16>
    %94 = arith.truncf %91 : vector<32x32xf32> to vector<32x32xbf16>
    %cst_38 = arith.constant dense<0.000000e+00> : vector<32x16xf32>
    %95 = tpu.matmul %94, %92, %cst_38 {dimension_numbers = #tpu.dot_dimension_numbers<[1], [0], [0], [1], [0, 0, 1, 1], [], []>} : vector<32x32xbf16>, vector<32x16xbf16>, vector<32x16xf32> -> vector<32x16xf32>
    %c0_39 = arith.constant 0 : index
    %c0_40 = arith.constant 0 : index
    %96 = vector.load %arg9[%c0_39, %c0_40] : memref<1x16xf32, #tpu.memory_space<vmem>>, vector<1x16xf32>
    %97 = vector.broadcast %96 : vector<1x16xf32> to vector<32x16xf32>
    %98 = arith.addf %95, %97 : vector<32x16xf32>
    %cst_41 = arith.constant 5.000000e-01 : f32
    %99 = vector.broadcast %cst_41 : f32 to vector<32x16xf32>
    %100 = arith.mulf %99, %98 : vector<32x16xf32>
    %101 = arith.mulf %98, %98 : vector<32x16xf32>
    %102 = arith.mulf %101, %98 : vector<32x16xf32>
    %cst_42 = arith.constant 4.471500e-02 : f32
    %103 = vector.broadcast %cst_42 : f32 to vector<32x16xf32>
    %104 = arith.mulf %103, %102 : vector<32x16xf32>
    %105 = arith.addf %98, %104 : vector<32x16xf32>
    %cst_43 = arith.constant 0.797884583 : f32
    %106 = vector.broadcast %cst_43 : f32 to vector<32x16xf32>
    %107 = arith.mulf %106, %105 : vector<32x16xf32>
    %108 = math.tanh %107 : vector<32x16xf32>
    %cst_44 = arith.constant 1.000000e+00 : f32
    %109 = vector.broadcast %cst_44 : f32 to vector<32x16xf32>
    %110 = arith.addf %109, %108 : vector<32x16xf32>
    %111 = arith.mulf %100, %110 : vector<32x16xf32>
    %112 = arith.truncf %111 : vector<32x16xf32> to vector<32x16xbf16>
    %cst_45 = arith.constant dense<0.000000e+00> : vector<32x32xf32>
    %113 = tpu.matmul %112, %93, %cst_45 {dimension_numbers = #tpu.dot_dimension_numbers<[1], [0], [0], [1], [0, 0, 1, 1], [], []>} : vector<32x16xbf16>, vector<16x32xbf16>, vector<32x32xf32> -> vector<32x32xf32>
    %c0_46 = arith.constant 0 : index
    %c0_47 = arith.constant 0 : index
    %114 = vector.load %arg11[%c0_46, %c0_47] : memref<1x32xf32, #tpu.memory_space<vmem>>, vector<1x32xf32>
    %115 = vector.broadcast %114 : vector<1x32xf32> to vector<32x32xf32>
    %116 = arith.addf %113, %115 : vector<32x32xf32>
    %117 = arith.addf %71, %116 : vector<32x32xf32>
    %c0_48 = arith.constant 0 : index
    %c0_49 = arith.constant 0 : index
    %118 = vector.load %arg12[%c0_48, %c0_49] : memref<32x32xf32, #tpu.memory_space<vmem>>, vector<32x32xf32>
    tpu.vector_store %arg12[%c0_48, %c0_49], %117 {strides = array<i32>} : memref<32x32xf32, #tpu.memory_space<vmem>>, vector<32x32xf32>,
    return
  }
  func.func @transform_0(%arg0: i32) -> (i32, i32) {
    %c0_i32 = arith.constant 0 : i32
    %c0_i32_0 = arith.constant 0 : i32
    return %arg0, %c0_i32 : i32, i32
  }
  func.func @transform_1(%arg0: i32) -> (i32, i32) {
    %c0_i32 = arith.constant 0 : i32
    %c0_i32_0 = arith.constant 0 : i32
    %c0_i32_1 = arith.constant 0 : i32
    return %c0_i32, %c0_i32_0 : i32, i32
  }
  func.func @transform_2(%arg0: i32) -> (i32, i32) {
    %c0_i32 = arith.constant 0 : i32
    %c0_i32_0 = arith.constant 0 : i32
    %c0_i32_1 = arith.constant 0 : i32
    return %c0_i32, %c0_i32_0 : i32, i32
  }
  func.func @transform_3(%arg0: i32) -> (i32, i32) {
    %c0_i32 = arith.constant 0 : i32
    %c0_i32_0 = arith.constant 0 : i32
    %c0_i32_1 = arith.constant 0 : i32
    return %c0_i32, %c0_i32_0 : i32, i32
  }
  func.func @transform_4(%arg0: i32) -> (i32, i32) {
    %c0_i32 = arith.constant 0 : i32
    %c0_i32_0 = arith.constant 0 : i32
    %c0_i32_1 = arith.constant 0 : i32
    return %c0_i32, %c0_i32_0 : i32, i32
  }
  func.func @transform_5(%arg0: i32) -> (i32, i32) {
    %c0_i32 = arith.constant 0 : i32
    %c0_i32_0 = arith.constant 0 : i32
    %c0_i32_1 = arith.constant 0 : i32
    return %c0_i32, %c0_i32_0 : i32, i32
  }
  func.func @transform_6(%arg0: i32) -> (i32, i32) {
    %c0_i32 = arith.constant 0 : i32
    %c0_i32_0 = arith.constant 0 : i32
    %c0_i32_1 = arith.constant 0 : i32
    return %c0_i32, %c0_i32_0 : i32, i32
  }
  func.func @transform_7(%arg0: i32) -> (i32, i32) {
    %c0_i32 = arith.constant 0 : i32
    %c0_i32_0 = arith.constant 0 : i32
    %c0_i32_1 = arith.constant 0 : i32
    return %c0_i32, %c0_i32_0 : i32, i32
  }
  func.func @transform_8(%arg0: i32) -> (i32, i32) {
    %c0_i32 = arith.constant 0 : i32
    %c0_i32_0 = arith.constant 0 : i32
    %c0_i32_1 = arith.constant 0 : i32
    return %c0_i32, %c0_i32_0 : i32, i32
  }
  func.func @transform_9(%arg0: i32) -> (i32, i32) {
    %c0_i32 = arith.constant 0 : i32
    %c0_i32_0 = arith.constant 0 : i32
    %c0_i32_1 = arith.constant 0 : i32
    return %c0_i32, %c0_i32_0 : i32, i32
  }
  func.func @transform_10(%arg0: i32) -> (i32, i32) {
    %c0_i32 = arith.constant 0 : i32
    %c0_i32_0 = arith.constant 0 : i32
    %c0_i32_1 = arith.constant 0 : i32
    return %c0_i32, %c0_i32_0 : i32, i32
  }
  func.func @transform_11(%arg0: i32) -> (i32, i32) {
    %c0_i32 = arith.constant 0 : i32
    %c0_i32_0 = arith.constant 0 : i32
    return %arg0, %c0_i32 : i32, i32
  }
}

</mosaic_0001>

<llo_original>
// kernel: tpu_custom_call.1
$region0: #{tpu_custom_call.1}
  #allocation0 [shape = 'u32[]', space=smem, size = 0x4, offset = 0x4, fixed_abs, tag = 'smem constant byte address 0x4 - core index']
  #allocation1 [shape = 'u32[144,128]{1,0:T(1,128)}', space=vmem, size = 0x12000, scoped, tag = 'internal scratch']
  %s0 = inlined_call_operand.vmem [shape: f32[64,32], index: 0, kind: input, shape index: {}]
  %s1 = inlined_call_operand.vmem [shape: f32[1,32], index: 1, kind: input, shape index: {}]
  %s2 = inlined_call_operand.vmem [shape: f32[1,32], index: 2, kind: input, shape index: {}]
  %s3 = inlined_call_operand.vmem [shape: bf16[16,16], index: 3, kind: input, shape index: {}]
  %s4 = inlined_call_operand.vmem [shape: f32[16,1], index: 4, kind: input, shape index: {}]
  %s5 = inlined_call_operand.vmem [shape: bf16[16,16], index: 5, kind: input, shape index: {}]
  %s6 = inlined_call_operand.vmem [shape: f32[16,1], index: 6, kind: input, shape index: {}]
  %s7 = inlined_call_operand.vmem [shape: bf16[32,16], index: 7, kind: input, shape index: {}]
  %s8 = inlined_call_operand.vmem [shape: f32[1,16], index: 8, kind: input, shape index: {}]
  %s9 = inlined_call_operand.vmem [shape: bf16[16,32], index: 9, kind: input, shape index: {}]
  %s10 = inlined_call_operand.vmem [shape: f32[1,32], index: 10, kind: input, shape index: {}]
  %s11 = inlined_call_operand.vmem [shape: f32[64,32], index: 11, kind: output, shape index: {}]
  %s12 = sld [smem:[#allocation0]]
  $region77: #{tpu_custom_call.1} parent=0
    _
  %s14 = ssub.s32 1, %s12
  %s15 = scalar_select 0, %s14, %s12
  loop: start=0, step=1, limit=4
  $region2: #{tpu_custom_call.1} parent=0 // loop_pre_header
    _
  $region3: #{tpu_custom_call.1} parent=0 // loop_header
    %s17 = sphi 0, %s21
    %p18 = scmp.ge.s32.totalorder %s17, 4
    %s27 = sphi 0, %s29
    %s30 = sphi 0, %s27
    %s31 = sphi 0, %s30
    %s47 = sphi 0, %s31
    %s51 = sphi 0, %s51
    %s53 = sphi 0, %s51
    %s54 = sphi 0, %s53
    %s68 = sphi 0, %s54
    %s72 = sphi 0, %s72
    %s74 = sphi 0, %s72
    %s75 = sphi 0, %s74
    %s89 = sphi 0, %s75
    %s93 = sphi 0, %s93
    %s95 = sphi 0, %s93
    %s96 = sphi 0, %s95
    %s110 = sphi 0, %s96
    %s114 = sphi 0, %s114
    %s116 = sphi 0, %s114
    %s117 = sphi 0, %s116
    %s131 = sphi 0, %s117
    %s135 = sphi 0, %s135
    %s137 = sphi 0, %s135
    %s138 = sphi 0, %s137
    %s152 = sphi 0, %s138
    %s156 = sphi 0, %s156
    %s158 = sphi 0, %s156
    %s159 = sphi 0, %s158
    %s173 = sphi 0, %s159
    %s177 = sphi 0, %s177
    %s179 = sphi 0, %s177
    %s180 = sphi 0, %s179
    %s194 = sphi 0, %s180
    %s198 = sphi 0, %s198
    %s200 = sphi 0, %s198
    %s201 = sphi 0, %s200
    %s215 = sphi 0, %s201
    %s219 = sphi 0, %s219
    %s221 = sphi 0, %s219
    %s222 = sphi 0, %s221
    %s236 = sphi 0, %s222
    %s240 = sphi 0, %s240
    %s242 = sphi 0, %s240
    %s243 = sphi 0, %s242
    %s257 = sphi 0, %s243
    %s263 = sphi 0, %s265
    %s266 = sphi 0, %s263
    %s267 = sphi 0, %s266
    %s283 = sphi 0, %s267
  $region4: #{tpu_custom_call.1} parent=0 // loop_header_branch
    %20 = sbr.rel (%p18) target = $region8
  $region5: #{tpu_custom_call.1} parent=0 // loop_body
    %s22 = ssub.s32 %s17, 1
    %s23 = ssub.s32 %s17, 2
    %s24 = sadd.s32 %s17, 1
    %s25 = ssub.s32 %s17, %s24
    %p26 = scmp.eq.s32.totalorder %s25, 0
    %s28 = sadd.s32 %s27, 1
    %s29 = scalar_select %p26, %s27, %s28
    %p32 = pneg %p26
    %p33 = scmp.eq.s32.totalorder %s17, 1
    %p34 = por %p32, %p33
    %p35 = scmp.ne.s32.totalorder %s27, %s30
    %p36 = scmp.eq.s32.totalorder %s17, 0
    %p37 = por %p35, %p36
    %p38 = scmp.ne.s32.totalorder %s27, %s30
    %p39 = scmp.eq.s32.totalorder %s22, 1
    %p40 = por %p38, %p39
    %p41 = scmp.ne.s32.totalorder %s30, %s31
    %p42 = scmp.eq.s32.totalorder %s22, 0
    %p43 = por %p41, %p42
    %p44 = scmp.ne.s32.totalorder %s30, %s31
    %p45 = scmp.eq.s32.totalorder %s23, 1
    %p46 = por %p44, %p45
    %p48 = scmp.ne.s32.totalorder %s31, %s47
    %p49 = scmp.eq.s32.totalorder %s23, 0
    %p50 = por %p48, %p49
    %s52 = sadd.s32 %s51, 1
    %p55 = scmp.eq.s32.totalorder %s17, 1
    %p56 = scmp.ne.s32.totalorder %s51, %s53
    %p57 = scmp.eq.s32.totalorder %s17, 0
    %p58 = por %p56, %p57
    %p59 = scmp.ne.s32.totalorder %s51, %s53
    %p60 = scmp.eq.s32.totalorder %s22, 1
    %p61 = por %p59, %p60
    %p62 = scmp.ne.s32.totalorder %s53, %s54
    %p63 = scmp.eq.s32.totalorder %s22, 0
    %p64 = por %p62, %p63
    %p65 = scmp.ne.s32.totalorder %s53, %s54
    %p66 = scmp.eq.s32.totalorder %s23, 1
    %p67 = por %p65, %p66
    %p69 = scmp.ne.s32.totalorder %s54, %s68
    %p70 = scmp.eq.s32.totalorder %s23, 0
    %p71 = por %p69, %p70
    %s73 = sadd.s32 %s72, 1
    %p76 = scmp.eq.s32.totalorder %s17, 1
    %p77 = scmp.ne.s32.totalorder %s72, %s74
    %p78 = scmp.eq.s32.totalorder %s17, 0
    %p79 = por %p77, %p78
    %p80 = scmp.ne.s32.totalorder %s72, %s74
    %p81 = scmp.eq.s32.totalorder %s22, 1
    %p82 = por %p80, %p81
    %p83 = scmp.ne.s32.totalorder %s74, %s75
    %p84 = scmp.eq.s32.totalorder %s22, 0
    %p85 = por %p83, %p84
    %p86 = scmp.ne.s32.totalorder %s74, %s75
    %p87 = scmp.eq.s32.totalorder %s23, 1
    %p88 = por %p86, %p87
    %p90 = scmp.ne.s32.totalorder %s75, %s89
    %p91 = scmp.eq.s32.totalorder %s23, 0
    %p92 = por %p90, %p91
    %s94 = sadd.s32 %s93, 1
    %p97 = scmp.eq.s32.totalorder %s17, 1
    %p98 = scmp.ne.s32.totalorder %s93, %s95
    %p99 = scmp.eq.s32.totalorder %s17, 0
    %p100 = por %p98, %p99
    %p101 = scmp.ne.s32.totalorder %s93, %s95
    %p102 = scmp.eq.s32.totalorder %s22, 1
    %p103 = por %p101, %p102
    %p104 = scmp.ne.s32.totalorder %s95, %s96
    %p105 = scmp.eq.s32.totalorder %s22, 0
    %p106 = por %p104, %p105
    %p107 = scmp.ne.s32.totalorder %s95, %s96
    %p108 = scmp.eq.s32.totalorder %s23, 1
    %p109 = por %p107, %p108
    %p111 = scmp.ne.s32.totalorder %s96, %s110
    %p112 = scmp.eq.s32.totalorder %s23, 0
    %p113 = por %p111, %p112
    %s115 = sadd.s32 %s114, 1
    %p118 = scmp.eq.s32.totalorder %s17, 1
    %p119 = scmp.ne.s32.totalorder %s114, %s116
    %p120 = scmp.eq.s32.totalorder %s17, 0
    %p121 = por %p119, %p120
    %p122 = scmp.ne.s32.totalorder %s114, %s116
    %p123 = scmp.eq.s32.totalorder %s22, 1
    %p124 = por %p122, %p123
    %p125 = scmp.ne.s32.totalorder %s116, %s117
    %p126 = scmp.eq.s32.totalorder %s22, 0
    %p127 = por %p125, %p126
    %p128 = scmp.ne.s32.totalorder %s116, %s117
    %p129 = scmp.eq.s32.totalorder %s23, 1
    %p130 = por %p128, %p129
    %p132 = scmp.ne.s32.totalorder %s117, %s131
    %p133 = scmp.eq.s32.totalorder %s23, 0
    %p134 = por %p132, %p133
    %s136 = sadd.s32 %s135, 1
    %p139 = scmp.eq.s32.totalorder %s17, 1
    %p140 = scmp.ne.s32.totalorder %s135, %s137
    %p141 = scmp.eq.s32.totalorder %s17, 0
    %p142 = por %p140, %p141
    %p143 = scmp.ne.s32.totalorder %s135, %s137
    %p144 = scmp.eq.s32.totalorder %s22, 1
    %p145 = por %p143, %p144
    %p146 = scmp.ne.s32.totalorder %s137, %s138
    %p147 = scmp.eq.s32.totalorder %s22, 0
    %p148 = por %p146, %p147
    %p149 = scmp.ne.s32.totalorder %s137, %s138
    %p150 = scmp.eq.s32.totalorder %s23, 1
    %p151 = por %p149, %p150
    %p153 = scmp.ne.s32.totalorder %s138, %s152
    %p154 = scmp.eq.s32.totalorder %s23, 0
    %p155 = por %p153, %p154
    %s157 = sadd.s32 %s156, 1
    %p160 = scmp.eq.s32.totalorder %s17, 1
    %p161 = scmp.ne.s32.totalorder %s156, %s158
    %p162 = scmp.eq.s32.totalorder %s17, 0
    %p163 = por %p161, %p162
    %p164 = scmp.ne.s32.totalorder %s156, %s158
    %p165 = scmp.eq.s32.totalorder %s22, 1
    %p166 = por %p164, %p165
    %p167 = scmp.ne.s32.totalorder %s158, %s159
    %p168 = scmp.eq.s32.totalorder %s22, 0
    %p169 = por %p167, %p168
    %p170 = scmp.ne.s32.totalorder %s158, %s159
    %p171 = scmp.eq.s32.totalorder %s23, 1
    %p172 = por %p170, %p171
    %p174 = scmp.ne.s32.totalorder %s159, %s173
    %p175 = scmp.eq.s32.totalorder %s23, 0
    %p176 = por %p174, %p175
    %s178 = sadd.s32 %s177, 1
    %p181 = scmp.eq.s32.totalorder %s17, 1
    %p182 = scmp.ne.s32.totalorder %s177, %s179
    %p183 = scmp.eq.s32.totalorder %s17, 0
    %p184 = por %p182, %p183
    %p185 = scmp.ne.s32.totalorder %s177, %s179
    %p186 = scmp.eq.s32.totalorder %s22, 1
    %p187 = por %p185, %p186
    %p188 = scmp.ne.s32.totalorder %s179, %s180
    %p189 = scmp.eq.s32.totalorder %s22, 0
    %p190 = por %p188, %p189
    %p191 = scmp.ne.s32.totalorder %s179, %s180
    %p192 = scmp.eq.s32.totalorder %s23, 1
    %p193 = por %p191, %p192
    %p195 = scmp.ne.s32.totalorder %s180, %s194
    %p196 = scmp.eq.s32.totalorder %s23, 0
    %p197 = por %p195, %p196
    %s199 = sadd.s32 %s198, 1
    %p202 = scmp.eq.s32.totalorder %s17, 1
    %p203 = scmp.ne.s32.totalorder %s198, %s200
    %p204 = scmp.eq.s32.totalorder %s17, 0
    %p205 = por %p203, %p204
    %p206 = scmp.ne.s32.totalorder %s198, %s200
    %p207 = scmp.eq.s32.totalorder %s22, 1
    %p208 = por %p206, %p207
    %p209 = scmp.ne.s32.totalorder %s200, %s201
    %p210 = scmp.eq.s32.totalorder %s22, 0
    %p211 = por %p209, %p210
    %p212 = scmp.ne.s32.totalorder %s200, %s201
    %p213 = scmp.eq.s32.totalorder %s23, 1
    %p214 = por %p212, %p213
    %p216 = scmp.ne.s32.totalorder %s201, %s215
    %p217 = scmp.eq.s32.totalorder %s23, 0
    %p218 = por %p216, %p217
    %s220 = sadd.s32 %s219, 1
    %p223 = scmp.eq.s32.totalorder %s17, 1
    %p224 = scmp.ne.s32.totalorder %s219, %s221
    %p225 = scmp.eq.s32.totalorder %s17, 0
    %p226 = por %p224, %p225
    %p227 = scmp.ne.s32.totalorder %s219, %s221
    %p228 = scmp.eq.s32.totalorder %s22, 1
    %p229 = por %p227, %p228
    %p230 = scmp.ne.s32.totalorder %s221, %s222
    %p231 = scmp.eq.s32.totalorder %s22, 0
    %p232 = por %p230, %p231
    %p233 = scmp.ne.s32.totalorder %s221, %s222
    %p234 = scmp.eq.s32.totalorder %s23, 1
    %p235 = por %p233, %p234
    %p237 = scmp.ne.s32.totalorder %s222, %s236
    %p238 = scmp.eq.s32.totalorder %s23, 0
    %p239 = por %p237, %p238
    %s241 = sadd.s32 %s240, 1
    %p244 = scmp.eq.s32.totalorder %s17, 1
    %p245 = scmp.ne.s32.totalorder %s240, %s242
    %p246 = scmp.eq.s32.totalorder %s17, 0
    %p247 = por %p245, %p246
    %p248 = scmp.ne.s32.totalorder %s240, %s242
    %p249 = scmp.eq.s32.totalorder %s22, 1
    %p250 = por %p248, %p249
    %p251 = scmp.ne.s32.totalorder %s242, %s243
    %p252 = scmp.eq.s32.totalorder %s22, 0
    %p253 = por %p251, %p252
    %p254 = scmp.ne.s32.totalorder %s242, %s243
    %p255 = scmp.eq.s32.totalorder %s23, 1
    %p256 = por %p254, %p255
    %p258 = scmp.ne.s32.totalorder %s243, %s257
    %p259 = scmp.eq.s32.totalorder %s23, 0
    %p260 = por %p258, %p259
    %s261 = ssub.s32 %s17, %s24
    %p262 = scmp.eq.s32.totalorder %s261, 0
    %s264 = sadd.s32 %s263, 1
    %s265 = scalar_select %p262, %s263, %s264
    %p268 = pneg %p262
    %p269 = scmp.eq.s32.totalorder %s17, 1
    %p270 = por %p268, %p269
    %p271 = scmp.ne.s32.totalorder %s263, %s266
    %p272 = scmp.eq.s32.totalorder %s17, 0
    %p273 = por %p271, %p272
    %p274 = scmp.ne.s32.totalorder %s263, %s266
    %p275 = scmp.eq.s32.totalorder %s22, 1
    %p276 = por %p274, %p275
    %p277 = scmp.ne.s32.totalorder %s266, %s267
    %p278 = scmp.eq.s32.totalorder %s22, 0
    %p279 = por %p277, %p278
    %p280 = scmp.ne.s32.totalorder %s266, %s267
    %p281 = scmp.eq.s32.totalorder %s23, 1
    %p282 = por %p280, %p281
    %p284 = scmp.ne.s32.totalorder %s267, %s283
    %p285 = scmp.eq.s32.totalorder %s23, 0
    %p286 = por %p284, %p285
    %p287 = scmp.le.s32.totalorder 1, %s17
    %p288 = scmp.lt.s32.totalorder %s17, 3
    %p289 = pnand %p287, %p288
    %p290 = pneg %p289
    // Predicated region
    $region9: #{tpu_custom_call.1} parent=5 // pred_check
      _
    $region10: #{tpu_custom_call.1} parent=5 // pred_check_branch
      %292 = sbr.rel (%p289) target = $region12
    $region11: #{tpu_custom_call.1} parent=5 // pred_region
      %s293 = ssub.s32 %s17, 1
      // Predicated region
      $region13: #{tpu_custom_call.1} parent=11 // pred_check
        %p294 = pneg %p64
      $region14: #{tpu_custom_call.1} parent=11 // pred_check_branch
        %296 = sbr.rel (%p294) target = $region16
      $region15: #{tpu_custom_call.1} parent=11 // pred_region
        _
      $region16: #{tpu_custom_call.1} parent=11 // pred_fallthru
        _
      // Predicated region
      $region17: #{tpu_custom_call.1} parent=11 // pred_check
        %p297 = pneg %p85
      $region18: #{tpu_custom_call.1} parent=11 // pred_check_branch
        %299 = sbr.rel (%p297) target = $region20
      $region19: #{tpu_custom_call.1} parent=11 // pred_region
        _
      $region20: #{tpu_custom_call.1} parent=11 // pred_fallthru
        _
      // Predicated region
      $region21: #{tpu_custom_call.1} parent=11 // pred_check
        %p300 = pneg %p106
      $region22: #{tpu_custom_call.1} parent=11 // pred_check_branch
        %302 = sbr.rel (%p300) target = $region24
      $region23: #{tpu_custom_call.1} parent=11 // pred_region
        _
      $region24: #{tpu_custom_call.1} parent=11 // pred_fallthru
        _
      // Predicated region
      $region25: #{tpu_custom_call.1} parent=11 // pred_check
        %p303 = pneg %p127
      $region26: #{tpu_custom_call.1} parent=11 // pred_check_branch
        %305 = sbr.rel (%p303) target = $region28
      $region27: #{tpu_custom_call.1} parent=11 // pred_region
        _
      $region28: #{tpu_custom_call.1} parent=11 // pred_fallthru
        _
      // Predicated region
      $region29: #{tpu_custom_call.1} parent=11 // pred_check
        %p306 = pneg %p148
      $region30: #{tpu_custom_call.1} parent=11 // pred_check_branch
        %308 = sbr.rel (%p306) target = $region32
      $region31: #{tpu_custom_call.1} parent=11 // pred_region
        _
      $region32: #{tpu_custom_call.1} parent=11 // pred_fallthru
        _
      // Predicated region
      $region33: #{tpu_custom_call.1} parent=11 // pred_check
        %p309 = pneg %p169
      $region34: #{tpu_custom_call.1} parent=11 // pred_check_branch
        %311 = sbr.rel (%p309) target = $region36
      $region35: #{tpu_custom_call.1} parent=11 // pred_region
        _
      $region36: #{tpu_custom_call.1} parent=11 // pred_fallthru
        _
      // Predicated region
      $region37: #{tpu_custom_call.1} parent=11 // pred_check
        %p312 = pneg %p190
      $region38: #{tpu_custom_call.1} parent=11 // pred_check_branch
        %314 = sbr.rel (%p312) target = $region40
      $region39: #{tpu_custom_call.1} parent=11 // pred_region
        _
      $region40: #{tpu_custom_call.1} parent=11 // pred_fallthru
        _
      // Predicated region
      $region41: #{tpu_custom_call.1} parent=11 // pred_check
        %p315 = pneg %p211
      $region42: #{tpu_custom_call.1} parent=11 // pred_check_branch
        %317 = sbr.rel (%p315) target = $region44
      $region43: #{tpu_custom_call.1} parent=11 // pred_region
        _
      $region44: #{tpu_custom_call.1} parent=11 // pred_fallthru
        _
      // Predicated region
      $region45: #{tpu_custom_call.1} parent=11 // pred_check
        %p318 = pneg %p232
      $region46: #{tpu_custom_call.1} parent=11 // pred_check_branch
        %320 = sbr.rel (%p318) target = $region48
      $region47: #{tpu_custom_call.1} parent=11 // pred_region
        _
      $region48: #{tpu_custom_call.1} parent=11 // pred_fallthru
        _
      // Predicated region
      $region49: #{tpu_custom_call.1} parent=11 // pred_check
        %p321 = pneg %p253
      $region50: #{tpu_custom_call.1} parent=11 // pred_check_branch
        %323 = sbr.rel (%p321) target = $region52
      $region51: #{tpu_custom_call.1} parent=11 // pred_region
        _
      $region52: #{tpu_custom_call.1} parent=11 // pred_fallthru
        _
    $region12: #{tpu_custom_call.1} parent=5 // pred_fallthru
      _
    %p324 = scmp.lt.s32.totalorder %s17, 2
    // Predicated region
    $region53: #{tpu_custom_call.1} parent=5 // pred_check
      %p325 = pneg %p324
    $region54: #{tpu_custom_call.1} parent=5 // pred_check_branch
      %327 = sbr.rel (%p325) target = $region56
    $region55: #{tpu_custom_call.1} parent=5 // pred_region
      // Predicated region
      $region57: #{tpu_custom_call.1} parent=55 // pred_check
        %p328 = pneg %p37
      $region58: #{tpu_custom_call.1} parent=55 // pred_check_branch
        %330 = sbr.rel (%p328) target = $region60
      $region59: #{tpu_custom_call.1} parent=55 // pred_region
        %s331 = smul.u32 4, %s17
        %p332 = scmp.lt.s32.totalorder %s331, 7
        %s333 = scalar_select %p332, %s331, 7
        %s334 = smul.addr %s333, 8
        %s335 = scalar_lea.vmem %s0, %s334
        %s336 = smul.u32 4, %s17
      $region60: #{tpu_custom_call.1} parent=55 // pred_fallthru
        _
    $region56: #{tpu_custom_call.1} parent=5 // pred_fallthru
      _
    %p337 = scmp.le.s32.totalorder 1, %s17
    %p338 = scmp.lt.s32.totalorder %s17, 3
    %p339 = pnand %p337, %p338
    %p340 = pneg %p339
    // Predicated region
    $region61: #{tpu_custom_call.1} parent=5 // pred_check
      _
    $region62: #{tpu_custom_call.1} parent=5 // pred_check_branch
      %342 = sbr.rel (%p339) target = $region64
    $region63: #{tpu_custom_call.1} parent=5 // pred_region
      %s343 = ssub.s32 %s17, 1
      %s344 = smul.u32 4, %s22
      %p345 = scmp.lt.s32.totalorder %s344, 7
      %s346 = scalar_select %p345, %s344, 7
      %s347 = smul.addr %s346, 8
      %s348 = scalar_lea.vmem %s0, %s347
      %p349 = pneg %p43
      %p350 = pneg %p40
      %p351 = pneg %p64
      %p352 = pneg %p61
      %p353 = pneg %p85
      %p354 = pneg %p82
      %p355 = pneg %p106
      %p356 = pneg %p103
      %p357 = pneg %p127
      %p358 = pneg %p124
      %p359 = pneg %p148
      %p360 = pneg %p145
      %p361 = pneg %p169
      %p362 = pneg %p166
      %p363 = pneg %p190
      %p364 = pneg %p187
      %p365 = pneg %p211
      %p366 = pneg %p208
      %p367 = pneg %p232
      %p368 = pneg %p229
      %p369 = pneg %p253
      %p370 = pneg %p250
      %p371 = pneg %p279
      %p372 = pneg %p276
      %s373 = smul.u32 4, %s22
      %p374 = scmp.lt.s32.totalorder %s373, 7
      %s375 = scalar_select %p374, %s373, 7
      %s376 = smul.addr %s375, 8
      %s377 = scalar_lea.vmem %s11, %s376
      %s378 = smul.u32 4, %s22
      %p379 = scmp.lt.s32.totalorder %s378, 7
      %s380 = scalar_select %p379, %s378, 7
      %s381 = smul.addr %s380, 8
      %s382 = scalar_lea.vmem %s0, %s381
      %s383 = smul.u32 4, %s22
      %s384 = smul.u32 4, %s22
      %p385 = scmp.lt.s32.totalorder %s384, 7
      %s386 = scalar_select %p385, %s384, 7
      %s387 = smul.addr %s386, 8
      %s388 = scalar_lea.vmem %s11, %s387
      %s389 = smul.u32 4, %s22
      %v391 = vld [vmem:[%s382] sm:$0xff]
      %v392 = vld [vmem:[%s382 + $0x8] sm:$0xff]
      %v393 = vld [vmem:[%s382 + $0x10] sm:$0xff]
      %v394 = vld [vmem:[%s382 + $0x18] sm:$0xff]
      %v395 = vld [vmem:[%s1] sm:$0x1]
      %v396 = vld [vmem:[%s2] sm:$0x1]
      %vm397 = vcmask 261120
      %v398 = vsel %vm397, %v391, 0.0
      %399 = vadd.xlane.f32.xlu0 %v398
      %v400 = vpop.xlane.xlu0 %399
      %v401 = vsel %vm397, %v392, 0.0
      %402 = vadd.xlane.f32.xlu0 %v401
      %v403 = vpop.xlane.xlu0 %402
      %v404 = vsel %vm397, %v393, 0.0
      %405 = vadd.xlane.f32.xlu0 %v404
      %v406 = vpop.xlane.xlu0 %405
      %v407 = vsel %vm397, %v394, 0.0
      %408 = vadd.xlane.f32.xlu0 %v407
      %v409 = vpop.xlane.xlu0 %408
      %v410 = vrcp.pop 32.0
      %v411 = vmul.f32 %v400, %v410
      %v412 = vmul.f32 %v403, %v410
      %v413 = vmul.f32 %v406, %v410
      %v414 = vmul.f32 %v409, %v410
      %v415 = vsub.f32 %v391, %v411
      %v416 = vsub.f32 %v392, %v412
      %v417 = vsub.f32 %v393, %v413
      %v418 = vsub.f32 %v394, %v414
      %v419 = vmul.f32 %v415, %v415
      %v420 = vmul.f32 %v416, %v416
      %v421 = vmul.f32 %v417, %v417
      %v422 = vmul.f32 %v418, %v418
      %v423 = vsel %vm397, %v419, 0.0
      %424 = vadd.xlane.f32.xlu0 %v423
      %v425 = vpop.xlane.xlu0 %424
      %v426 = vsel %vm397, %v420, 0.0
      %427 = vadd.xlane.f32.xlu0 %v426
      %v428 = vpop.xlane.xlu0 %427
      %v429 = vsel %vm397, %v421, 0.0
      %430 = vadd.xlane.f32.xlu0 %v429
      %v431 = vpop.xlane.xlu0 %430
      %v432 = vsel %vm397, %v422, 0.0
      %433 = vadd.xlane.f32.xlu0 %v432
      %v434 = vpop.xlane.xlu0 %433
      %v435 = vmul.f32 %v425, %v410
      %v436 = vmul.f32 %v428, %v410
      %v437 = vmul.f32 %v431, %v410
      %v438 = vmul.f32 %v434, %v410
      %v439 = vadd.f32 %v435, 1e-05
      %v440 = vadd.f32 %v436, 1e-05
      %v441 = vadd.f32 %v437, 1e-05
      %v442 = vadd.f32 %v438, 1e-05
      %v443 = vrsqrt.pop %v439
      %v444 = vrsqrt.pop %v440
      %v445 = vrsqrt.pop %v441
      %v446 = vrsqrt.pop %v442
      %v447 = vmul.f32 %v415, %v443
      %v448 = vmul.f32 %v416, %v444
      %v449 = vmul.f32 %v417, %v445
      %v450 = vmul.f32 %v418, %v446
      %v452 = vlaneseq
      %v453 = vshrl.u32 %v452, 7
      %v454 = vsub.s32 0, %v453
      %v455 = vrot.slane %v395, %v454
      %v457 = vmul.f32 %v447, %v455
      %v458 = vmul.f32 %v448, %v455
      %v459 = vmul.f32 %v449, %v455
      %v460 = vmul.f32 %v450, %v455
      %v462 = vlaneseq
      %v463 = vshrl.u32 %v462, 7
      %v464 = vsub.s32 0, %v463
      %v465 = vrot.slane %v396, %v464
      %v467 = vadd.f32 %v457, %v465
      %v468 = vadd.f32 %v458, %v465
      %v469 = vadd.f32 %v459, %v465
      %v470 = vadd.f32 %v460, %v465
      %v471 = vpack.c.bf16 %v468, %v467
      %v472 = vpack.c.bf16 %v470, %v469
      %v473 = vld [vmem:[%s3] sm:$0xf]
      %v474 = vld [vmem:[%s3 + $0x4] sm:$0xf]
      %v475 = vld [vmem:[%s4] sm:$0xff]
      %v476 = vld [vmem:[%s4 + $0x8] sm:$0xff]
      %v477 = vld [vmem:[%s5] sm:$0xf]
      %v478 = vld [vmem:[%s5 + $0x4] sm:$0xf]
      %v479 = vld [vmem:[%s6] sm:$0xff]
      %v480 = vld [vmem:[%s6 + $0x8] sm:$0xff]
      %482 = vset.pattern.permute.xlu0 0
      %483 = vperm.xlu0 %482, %v475
      %v484 = vpop.permute.xlu0 %483
      %487 = vset.pattern.permute.xlu0 0
      %488 = vperm.xlu0 %487, %v476
      %v489 = vpop.permute.xlu0 %488
      %v493 = vunpack.c.l.b16 %v473
      %v494 = vunpack.c.l.b16 %v474
      %v495 = vpack.c.b16 %v494, %v493
      %vm496 = vcmask 130048
      %v498 = vsel %vm496, %v495, 0
      %500 = vmatprep.subr.bf16.mxu0 0
      %501 = vmatpush1.bf16.msra.mxu0 %v471
      %502 = vmatprep.subr.bf16.mxu0 0
      %503 = vmatpush1.bf16.msra.mxu0 0
      %504 = vmatprep.subr.bf16.mxu0 0
      %505 = vmatpush1.bf16.msra.mxu0 0
      %506 = vmatprep.subr.bf16.mxu0 0
      %507 = vmatpush1.bf16.msra.mxu0 0
      %508 = vmatprep.subr.bf16.mxu0 0
      %509 = vmatpush1.bf16.msra.mxu0 0
      %510 = vmatprep.subr.bf16.mxu0 0
      %511 = vmatpush1.bf16.msra.mxu0 0
      %512 = vmatprep.subr.bf16.mxu0 0
      %513 = vmatpush1.bf16.msra.mxu0 0
      %514 = vmatprep.subr.bf16.mxu0 0
      %515 = vmatpush1.bf16.msra.mxu0 0
      %516 = vmatprep.subr.bf16.mxu0 0
      %517 = vmatpush1.bf16.msra.mxu0 0
      %518 = vmatprep.subr.bf16.mxu0 0
      %519 = vmatpush1.bf16.msra.mxu0 0
      %520 = vmatprep.subr.bf16.mxu0 0
      %521 = vmatpush1.bf16.msra.mxu0 0
      %522 = vmatprep.subr.bf16.mxu0 0
      %523 = vmatpush1.bf16.msra.mxu0 0
      %524 = vmatprep.subr.bf16.mxu0 0
      %525 = vmatpush1.bf16.msra.mxu0 0
      %526 = vmatprep.subr.bf16.mxu0 0
      %527 = vmatpush1.bf16.msra.mxu0 0
      %528 = vmatprep.subr.bf16.mxu0 0
      %529 = vmatpush1.bf16.msra.mxu0 0
      %530 = vmatprep.subr.bf16.mxu0 0
      %531 = vmatpush1.bf16.msra.mxu0 0
      %532 = vmatprep.mubr.bf16.mxu0 0
      %533 = vmatmul.mubr.bf16.gmra.mrb[0].mxu0 %v498
      %v534 = vpop.f32.mrb[0].mxu0
      %v535 = vadd.f32 %v484, %v534
      %v536 = vpop.f32.mrb[0].mxu0
      %v537 = vpop.f32.mrb[0].mxu0
      %v538 = vadd.f32 %v489, %v537
      %v539 = vpop.f32.mrb[0].mxu0
      %540 = vdwg.mxu0
      %v541 = vmul.f32 %v535, 0.5
      %v542 = vmul.f32 %v538, 0.5
      %v543 = vmul.f32 %v535, %v535
      %v544 = vmul.f32 %v538, %v538
      %v545 = vmul.f32 %v543, %v535
      %v546 = vmul.f32 %v544, %v538
      %v547 = vmul.f32 %v545, 0.044715
      %v548 = vmul.f32 %v546, 0.044715
      %v549 = vadd.f32 %v535, %v547
      %v550 = vadd.f32 %v538, %v548
      %v551 = vmul.f32 %v549, 0.7978846
      %v552 = vmul.f32 %v550, 0.7978846
      %v553 = vtanh.pop %v551
      %v554 = vtanh.pop %v552
      %v555 = vadd.f32 %v553, 1.0
      %v556 = vadd.f32 %v554, 1.0
      %v557 = vmul.f32 %v541, %v555
      %v558 = vmul.f32 %v542, %v556
      %v559 = vpack.c.bf16 %v558, %v557
      %561 = vset.pattern.permute.xlu0 0
      %562 = vperm.xlu0 %561, %v479
      %v563 = vpop.permute.xlu0 %562
      %566 = vset.pattern.permute.xlu0 0
      %567 = vperm.xlu0 %566, %v480
      %v568 = vpop.permute.xlu0 %567
      %v572 = vunpack.c.l.b16 %v477
      %v573 = vunpack.c.l.b16 %v478
      %v574 = vpack.c.b16 %v573, %v572
      %v576 = vsel %vm496, %v574, 0
      %578 = vmatprep.subr.bf16.mxu0 0
      %579 = vmatpush1.bf16.msra.mxu0 %v559
      %580 = vmatprep.subr.bf16.mxu0 0
      %581 = vmatpush1.bf16.msra.mxu0 0
      %582 = vmatprep.subr.bf16.mxu0 0
      %583 = vmatpush1.bf16.msra.mxu0 0
      %584 = vmatprep.subr.bf16.mxu0 0
      %585 = vmatpush1.bf16.msra.mxu0 0
      %586 = vmatprep.subr.bf16.mxu0 0
      %587 = vmatpush1.bf16.msra.mxu0 0
      %588 = vmatprep.subr.bf16.mxu0 0
      %589 = vmatpush1.bf16.msra.mxu0 0
      %590 = vmatprep.subr.bf16.mxu0 0
      %591 = vmatpush1.bf16.msra.mxu0 0
      %592 = vmatprep.subr.bf16.mxu0 0
      %593 = vmatpush1.bf16.msra.mxu0 0
      %594 = vmatprep.subr.bf16.mxu0 0
      %595 = vmatpush1.bf16.msra.mxu0 0
      %596 = vmatprep.subr.bf16.mxu0 0
      %597 = vmatpush1.bf16.msra.mxu0 0
      %598 = vmatprep.subr.bf16.mxu0 0
      %599 = vmatpush1.bf16.msra.mxu0 0
      %600 = vmatprep.subr.bf16.mxu0 0
      %601 = vmatpush1.bf16.msra.mxu0 0
      %602 = vmatprep.subr.bf16.mxu0 0
      %603 = vmatpush1.bf16.msra.mxu0 0
      %604 = vmatprep.subr.bf16.mxu0 0
      %605 = vmatpush1.bf16.msra.mxu0 0
      %606 = vmatprep.subr.bf16.mxu0 0
      %607 = vmatpush1.bf16.msra.mxu0 0
      %608 = vmatprep.subr.bf16.mxu0 0
      %609 = vmatpush1.bf16.msra.mxu0 0
      %610 = vmatprep.mubr.bf16.mxu0 0
      %611 = vmatmul.mubr.bf16.gmra.mrb[0].mxu0 %v576
      %v612 = vpop.f32.mrb[0].mxu0
      %v613 = vadd.f32 %v563, %v612
      %v614 = vpop.f32.mrb[0].mxu0
      %v615 = vpop.f32.mrb[0].mxu0
      %v616 = vadd.f32 %v568, %v615
      %v617 = vpop.f32.mrb[0].mxu0
      %618 = vdwg.mxu0
      %619 = vmatprep.subr.bf16.mxu0 0
      %620 = vmatpush1.bf16.msra.mxu0 %v472
      %621 = vmatprep.subr.bf16.mxu0 0
      %622 = vmatpush1.bf16.msra.mxu0 0
      %623 = vmatprep.subr.bf16.mxu0 0
      %624 = vmatpush1.bf16.msra.mxu0 0
      %625 = vmatprep.subr.bf16.mxu0 0
      %626 = vmatpush1.bf16.msra.mxu0 0
      %627 = vmatprep.subr.bf16.mxu0 0
      %628 = vmatpush1.bf16.msra.mxu0 0
      %629 = vmatprep.subr.bf16.mxu0 0
      %630 = vmatpush1.bf16.msra.mxu0 0
      %631 = vmatprep.subr.bf16.mxu0 0
      %632 = vmatpush1.bf16.msra.mxu0 0
      %633 = vmatprep.subr.bf16.mxu0 0
      %634 = vmatpush1.bf16.msra.mxu0 0
      %635 = vmatprep.subr.bf16.mxu0 0
      %636 = vmatpush1.bf16.msra.mxu0 0
      %637 = vmatprep.subr.bf16.mxu0 0
      %638 = vmatpush1.bf16.msra.mxu0 0
      %639 = vmatprep.subr.bf16.mxu0 0
      %640 = vmatpush1.bf16.msra.mxu0 0
      %641 = vmatprep.subr.bf16.mxu0 0
      %642 = vmatpush1.bf16.msra.mxu0 0
      %643 = vmatprep.subr.bf16.mxu0 0
      %644 = vmatpush1.bf16.msra.mxu0 0
      %645 = vmatprep.subr.bf16.mxu0 0
      %646 = vmatpush1.bf16.msra.mxu0 0
      %647 = vmatprep.subr.bf16.mxu0 0
      %648 = vmatpush1.bf16.msra.mxu0 0
      %649 = vmatprep.subr.bf16.mxu0 0
      %650 = vmatpush1.bf16.msra.mxu0 0
      %651 = vmatprep.mubr.bf16.mxu0 0
      %652 = vmatmul.mubr.bf16.gmra.mrb[0].mxu0 %v498
      %v653 = vpop.f32.mrb[0].mxu0
      %v654 = vadd.f32 %v484, %v653
      %v655 = vpop.f32.mrb[0].mxu0
      %v656 = vpop.f32.mrb[0].mxu0
      %v657 = vadd.f32 %v489, %v656
      %v658 = vpop.f32.mrb[0].mxu0
      %659 = vdwg.mxu0
      %v660 = vmul.f32 %v654, 0.5
      %v661 = vmul.f32 %v657, 0.5
      %v662 = vmul.f32 %v654, %v654
      %v663 = vmul.f32 %v657, %v657
      %v664 = vmul.f32 %v662, %v654
      %v665 = vmul.f32 %v663, %v657
      %v666 = vmul.f32 %v664, 0.044715
      %v667 = vmul.f32 %v665, 0.044715
      %v668 = vadd.f32 %v654, %v666
      %v669 = vadd.f32 %v657, %v667
      %v670 = vmul.f32 %v668, 0.7978846
      %v671 = vmul.f32 %v669, 0.7978846
      %v672 = vtanh.pop %v670
      %v673 = vtanh.pop %v671
      %v674 = vadd.f32 %v672, 1.0
      %v675 = vadd.f32 %v673, 1.0
      %v676 = vmul.f32 %v660, %v674
      %v677 = vmul.f32 %v661, %v675
      %v678 = vpack.c.bf16 %v677, %v676
      %679 = vmatprep.subr.bf16.mxu0 0
      %680 = vmatpush1.bf16.msra.mxu0 %v678
      %681 = vmatprep.subr.bf16.mxu0 0
      %682 = vmatpush1.bf16.msra.mxu0 0
      %683 = vmatprep.subr.bf16.mxu0 0
      %684 = vmatpush1.bf16.msra.mxu0 0
      %685 = vmatprep.subr.bf16.mxu0 0
      %686 = vmatpush1.bf16.msra.mxu0 0
      %687 = vmatprep.subr.bf16.mxu0 0
      %688 = vmatpush1.bf16.msra.mxu0 0
      %689 = vmatprep.subr.bf16.mxu0 0
      %690 = vmatpush1.bf16.msra.mxu0 0
      %691 = vmatprep.subr.bf16.mxu0 0
      %692 = vmatpush1.bf16.msra.mxu0 0
      %693 = vmatprep.subr.bf16.mxu0 0
      %694 = vmatpush1.bf16.msra.mxu0 0
      %695 = vmatprep.subr.bf16.mxu0 0
      %696 = vmatpush1.bf16.msra.mxu0 0
      %697 = vmatprep.subr.bf16.mxu0 0
      %698 = vmatpush1.bf16.msra.mxu0 0
      %699 = vmatprep.subr.bf16.mxu0 0
      %700 = vmatpush1.bf16.msra.mxu0 0
      %701 = vmatprep.subr.bf16.mxu0 0
      %702 = vmatpush1.bf16.msra.mxu0 0
      %703 = vmatprep.subr.bf16.mxu0 0
      %704 = vmatpush1.bf16.msra.mxu0 0
      %705 = vmatprep.subr.bf16.mxu0 0
      %706 = vmatpush1.bf16.msra.mxu0 0
      %707 = vmatprep.subr.bf16.mxu0 0
      %708 = vmatpush1.bf16.msra.mxu0 0
      %709 = vmatprep.subr.bf16.mxu0 0
      %710 = vmatpush1.bf16.msra.mxu0 0
      %711 = vmatprep.mubr.bf16.mxu0 0
      %712 = vmatmul.mubr.bf16.gmra.mrb[0].mxu0 %v576
      %v713 = vpop.f32.mrb[0].mxu0
      %v714 = vadd.f32 %v563, %v713
      %v715 = vpop.f32.mrb[0].mxu0
      %v716 = vpop.f32.mrb[0].mxu0
      %v717 = vadd.f32 %v568, %v716
      %v718 = vpop.f32.mrb[0].mxu0
      %719 = vdwg.mxu0
      %v720 = vadd.f32 %v613, %v391
      %v721 = vadd.f32 %v616, %v392
      %v722 = vadd.f32 %v714, %v393
      %v723 = vadd.f32 %v717, %v394
      %v724 = vsel %vm397, %v720, 0.0
      %725 = vadd.xlane.f32.xlu0 %v724
      %v726 = vpop.xlane.xlu0 %725
      %v727 = vsel %vm397, %v721, 0.0
      %728 = vadd.xlane.f32.xlu0 %v727
      %v729 = vpop.xlane.xlu0 %728
      %v730 = vsel %vm397, %v722, 0.0
      %731 = vadd.xlane.f32.xlu0 %v730
      %v732 = vpop.xlane.xlu0 %731
      %v733 = vsel %vm397, %v723, 0.0
      %734 = vadd.xlane.f32.xlu0 %v733
      %v735 = vpop.xlane.xlu0 %734
      %v736 = vmul.f32 %v726, %v410
      %v737 = vmul.f32 %v729, %v410
      %v738 = vmul.f32 %v732, %v410
      %v739 = vmul.f32 %v735, %v410
      %v740 = vsub.f32 %v720, %v736
      %v741 = vsub.f32 %v721, %v737
      %v742 = vsub.f32 %v722, %v738
      %v743 = vsub.f32 %v723, %v739
      %v744 = vmul.f32 %v740, %v740
      %v745 = vmul.f32 %v741, %v741
      %v746 = vmul.f32 %v742, %v742
      %v747 = vmul.f32 %v743, %v743
      %v748 = vsel %vm397, %v744, 0.0
      %749 = vadd.xlane.f32.xlu0 %v748
      %v750 = vpop.xlane.xlu0 %749
      %v751 = vsel %vm397, %v745, 0.0
      %752 = vadd.xlane.f32.xlu0 %v751
      %v753 = vpop.xlane.xlu0 %752
      %v754 = vsel %vm397, %v746, 0.0
      %755 = vadd.xlane.f32.xlu0 %v754
      %v756 = vpop.xlane.xlu0 %755
      %v757 = vsel %vm397, %v747, 0.0
      %758 = vadd.xlane.f32.xlu0 %v757
      %v759 = vpop.xlane.xlu0 %758
      %v760 = vmul.f32 %v750, %v410
      %v761 = vmul.f32 %v753, %v410
      %v762 = vmul.f32 %v756, %v410
      %v763 = vmul.f32 %v759, %v410
      %v764 = vadd.f32 %v760, 1e-05
      %v765 = vadd.f32 %v761, 1e-05
      %v766 = vadd.f32 %v762, 1e-05
      %v767 = vadd.f32 %v763, 1e-05
      %v768 = vrsqrt.pop %v764
      %v769 = vrsqrt.pop %v765
      %v770 = vrsqrt.pop %v766
      %v771 = vrsqrt.pop %v767
      %v772 = vmul.f32 %v740, %v768
      %v773 = vmul.f32 %v741, %v769
      %v774 = vmul.f32 %v742, %v770
      %v775 = vmul.f32 %v743, %v771
      %v776 = vmul.f32 %v772, %v455
      %v777 = vmul.f32 %v773, %v455
      %v778 = vmul.f32 %v774, %v455
      %v779 = vmul.f32 %v775, %v455
      %v780 = vadd.f32 %v776, %v465
      %v781 = vadd.f32 %v777, %v465
      %v782 = vadd.f32 %v778, %v465
      %v783 = vadd.f32 %v779, %v465
      %v784 = vld [vmem:[%s7] sm:$0xf]
      %v785 = vld [vmem:[%s7 + $0x4] sm:$0xf]
      %v786 = vld [vmem:[%s7 + $0x8] sm:$0xf]
      %v787 = vld [vmem:[%s7 + $0xc] sm:$0xf]
      %v788 = vld [vmem:[%s9] sm:$0xf]
      %v789 = vld [vmem:[%s9 + $0x4] sm:$0xf]
      %v790 = vpack.c.bf16 %v781, %v780
      %v791 = vpack.c.bf16 %v783, %v782
      %v792 = vld [vmem:[%s8] sm:$0x1]
      %v794 = vlaneseq
      %v795 = vshrl.u32 %v794, 7
      %v796 = vsub.s32 0, %v795
      %v797 = vrot.slane %v792, %v796
      %v803 = vunpack.c.l.b16 %v784
      %v804 = vunpack.c.l.b16 %v785
      %v805 = vunpack.c.l.b16 %v786
      %v806 = vunpack.c.l.b16 %v787
      %v807 = vpack.c.b16 %v804, %v803
      %v808 = vpack.c.b16 %v806, %v805
      %v812 = vsel %vm397, %v790, 0
      %v815 = vsel %vm397, %v791, 0
      %817 = vmatprep.subr.bf16.mxu0 0
      %818 = vmatpush1.bf16.msra.mxu0 %v807
      %819 = vmatprep.subr.bf16.mxu0 0
      %820 = vmatpush1.bf16.msra.mxu0 %v808
      %821 = vmatprep.subr.bf16.mxu0 0
      %822 = vmatpush1.bf16.msra.mxu0 0
      %823 = vmatprep.subr.bf16.mxu0 0
      %824 = vmatpush1.bf16.msra.mxu0 0
      %825 = vmatprep.subr.bf16.mxu0 0
      %826 = vmatpush1.bf16.msra.mxu0 0
      %827 = vmatprep.subr.bf16.mxu0 0
      %828 = vmatpush1.bf16.msra.mxu0 0
      %829 = vmatprep.subr.bf16.mxu0 0
      %830 = vmatpush1.bf16.msra.mxu0 0
      %831 = vmatprep.subr.bf16.mxu0 0
      %832 = vmatpush1.bf16.msra.mxu0 0
      %833 = vmatprep.subr.bf16.mxu0 0
      %834 = vmatpush1.bf16.msra.mxu0 0
      %835 = vmatprep.subr.bf16.mxu0 0
      %836 = vmatpush1.bf16.msra.mxu0 0
      %837 = vmatprep.subr.bf16.mxu0 0
      %838 = vmatpush1.bf16.msra.mxu0 0
      %839 = vmatprep.subr.bf16.mxu0 0
      %840 = vmatpush1.bf16.msra.mxu0 0
      %841 = vmatprep.subr.bf16.mxu0 0
      %842 = vmatpush1.bf16.msra.mxu0 0
      %843 = vmatprep.subr.bf16.mxu0 0
      %844 = vmatpush1.bf16.msra.mxu0 0
      %845 = vmatprep.subr.bf16.mxu0 0
      %846 = vmatpush1.bf16.msra.mxu0 0
      %847 = vmatprep.subr.bf16.mxu0 0
      %848 = vmatpush1.bf16.msra.mxu0 0
      %849 = vmatprep.mubr.bf16.mxu0 0
      %850 = vmatmul.mubr.bf16.gmra.mrb[0].mxu0 %v812
      %v851 = vpop.f32.mrb[0].mxu0
      %v852 = vadd.f32 %v797, %v851
      %v853 = vpop.f32.mrb[0].mxu0
      %v854 = vpop.f32.mrb[0].mxu0
      %v855 = vadd.f32 %v797, %v854
      %v856 = vpop.f32.mrb[0].mxu0
      %857 = vmatprep.mubr.bf16.mxu0 0
      %858 = vmatmul.mubr.bf16.gmra.mrb[0].mxu0 %v815
      %v859 = vpop.f32.mrb[0].mxu0
      %v860 = vadd.f32 %v797, %v859
      %v861 = vpop.f32.mrb[0].mxu0
      %v862 = vpop.f32.mrb[0].mxu0
      %v863 = vadd.f32 %v797, %v862
      %v864 = vpop.f32.mrb[0].mxu0
      %865 = vdwg.mxu0
      %v866 = vmul.f32 %v852, 0.5
      %v867 = vmul.f32 %v855, 0.5
      %v868 = vmul.f32 %v860, 0.5
      %v869 = vmul.f32 %v863, 0.5
      %v870 = vmul.f32 %v852, %v852
      %v871 = vmul.f32 %v855, %v855
      %v872 = vmul.f32 %v860, %v860
      %v873 = vmul.f32 %v863, %v863
      %v874 = vmul.f32 %v870, %v852
      %v875 = vmul.f32 %v871, %v855
      %v876 = vmul.f32 %v872, %v860
      %v877 = vmul.f32 %v873, %v863
      %v878 = vmul.f32 %v874, 0.044715
      %v879 = vmul.f32 %v875, 0.044715
      %v880 = vmul.f32 %v876, 0.044715
      %v881 = vmul.f32 %v877, 0.044715
      %v882 = vadd.f32 %v852, %v878
      %v883 = vadd.f32 %v855, %v879
      %v884 = vadd.f32 %v860, %v880
      %v885 = vadd.f32 %v863, %v881
      %v886 = vmul.f32 %v882, 0.7978846
      %v887 = vmul.f32 %v883, 0.7978846
      %v888 = vmul.f32 %v884, 0.7978846
      %v889 = vmul.f32 %v885, 0.7978846
      %v890 = vtanh.pop %v886
      %v891 = vtanh.pop %v887
      %v892 = vtanh.pop %v888
      %v893 = vtanh.pop %v889
      %v894 = vadd.f32 %v890, 1.0
      %v895 = vadd.f32 %v891, 1.0
      %v896 = vadd.f32 %v892, 1.0
      %v897 = vadd.f32 %v893, 1.0
      %v898 = vmul.f32 %v866, %v894
      %v899 = vmul.f32 %v867, %v895
      %v900 = vmul.f32 %v868, %v896
      %v901 = vmul.f32 %v869, %v897
      %v902 = vpack.c.bf16 %v899, %v898
      %v903 = vpack.c.bf16 %v901, %v900
      %v904 = vld [vmem:[%s10] sm:$0x1]
      %v906 = vlaneseq
      %v907 = vshrl.u32 %v906, 7
      %v908 = vsub.s32 0, %v907
      %v909 = vrot.slane %v904, %v908
      %v913 = vunpack.c.l.b16 %v788
      %v914 = vunpack.c.l.b16 %v789
      %v915 = vpack.c.b16 %v914, %v913
      %v918 = vsel %vm496, %v902, 0
      %v921 = vsel %vm496, %v903, 0
      %923 = vmatprep.subr.bf16.mxu0 0
      %924 = vmatpush1.bf16.msra.mxu0 %v915
      %925 = vmatprep.subr.bf16.mxu0 0
      %926 = vmatpush1.bf16.msra.mxu0 0
      %927 = vmatprep.subr.bf16.mxu0 0
      %928 = vmatpush1.bf16.msra.mxu0 0
      %929 = vmatprep.subr.bf16.mxu0 0
      %930 = vmatpush1.bf16.msra.mxu0 0
      %931 = vmatprep.subr.bf16.mxu0 0
      %932 = vmatpush1.bf16.msra.mxu0 0
      %933 = vmatprep.subr.bf16.mxu0 0
      %934 = vmatpush1.bf16.msra.mxu0 0
      %935 = vmatprep.subr.bf16.mxu0 0
      %936 = vmatpush1.bf16.msra.mxu0 0
      %937 = vmatprep.subr.bf16.mxu0 0
      %938 = vmatpush1.bf16.msra.mxu0 0
      %939 = vmatprep.subr.bf16.mxu0 0
      %940 = vmatpush1.bf16.msra.mxu0 0
      %941 = vmatprep.subr.bf16.mxu0 0
      %942 = vmatpush1.bf16.msra.mxu0 0
      %943 = vmatprep.subr.bf16.mxu0 0
      %944 = vmatpush1.bf16.msra.mxu0 0
      %945 = vmatprep.subr.bf16.mxu0 0
      %946 = vmatpush1.bf16.msra.mxu0 0
      %947 = vmatprep.subr.bf16.mxu0 0
      %948 = vmatpush1.bf16.msra.mxu0 0
      %949 = vmatprep.subr.bf16.mxu0 0
      %950 = vmatpush1.bf16.msra.mxu0 0
      %951 = vmatprep.subr.bf16.mxu0 0
      %952 = vmatpush1.bf16.msra.mxu0 0
      %953 = vmatprep.subr.bf16.mxu0 0
      %954 = vmatpush1.bf16.msra.mxu0 0
      %955 = vmatprep.mubr.bf16.mxu0 0
      %956 = vmatmul.mubr.bf16.gmra.mrb[0].mxu0 %v918
      %v957 = vpop.f32.mrb[0].mxu0
      %v958 = vadd.f32 %v909, %v957
      %v959 = vpop.f32.mrb[0].mxu0
      %v960 = vpop.f32.mrb[0].mxu0
      %v961 = vadd.f32 %v909, %v960
      %v962 = vpop.f32.mrb[0].mxu0
      %963 = vmatprep.mubr.bf16.mxu0 0
      %964 = vmatmul.mubr.bf16.gmra.mrb[0].mxu0 %v921
      %v965 = vpop.f32.mrb[0].mxu0
      %v966 = vadd.f32 %v909, %v965
      %v967 = vpop.f32.mrb[0].mxu0
      %v968 = vpop.f32.mrb[0].mxu0
      %v969 = vadd.f32 %v909, %v968
      %v970 = vpop.f32.mrb[0].mxu0
      %971 = vdwg.mxu0
      %v972 = vadd.f32 %v720, %v958
      %v973 = vadd.f32 %v721, %v961
      %v974 = vadd.f32 %v722, %v966
      %v975 = vadd.f32 %v723, %v969
      %976 = vst.msk [vmem:[%s388] sm:$0xff] %vm397, %v972
      %977 = vst.msk [vmem:[%s388 + $0x8] sm:$0xff] %vm397, %v973
      %978 = vst.msk [vmem:[%s388 + $0x10] sm:$0xff] %vm397, %v974
      %979 = vst.msk [vmem:[%s388 + $0x18] sm:$0xff] %vm397, %v975
      %s980 = smul.u32 4, %s22
      %p981 = scmp.lt.s32.totalorder %s980, 7
      %s982 = scalar_select %p981, %s980, 7
      %s983 = smul.addr %s982, 8
      %s984 = scalar_lea.vmem %s11, %s983
      // Predicated region
      $region65: #{tpu_custom_call.1} parent=63 // pred_check
        %p985 = pneg %p276
      $region66: #{tpu_custom_call.1} parent=63 // pred_check_branch
        %987 = sbr.rel (%p985) target = $region68
      $region67: #{tpu_custom_call.1} parent=63 // pred_region
        %s988 = smul.u32 4, %s22
      $region68: #{tpu_custom_call.1} parent=63 // pred_fallthru
        _
    $region64: #{tpu_custom_call.1} parent=5 // pred_fallthru
      _
    %p989 = scmp.le.s32.totalorder 2, %s17
    // Predicated region
    $region69: #{tpu_custom_call.1} parent=5 // pred_check
      %p990 = pneg %p989
    $region70: #{tpu_custom_call.1} parent=5 // pred_check_branch
      %992 = sbr.rel (%p990) target = $region72
    $region71: #{tpu_custom_call.1} parent=5 // pred_region
      %s993 = ssub.s32 %s17, 2
      // Predicated region
      $region73: #{tpu_custom_call.1} parent=71 // pred_check
        %p994 = pneg %p282
      $region74: #{tpu_custom_call.1} parent=71 // pred_check_branch
        %996 = sbr.rel (%p994) target = $region76
      $region75: #{tpu_custom_call.1} parent=71 // pred_region
        %s997 = smul.u32 4, %s23
        %p998 = scmp.lt.s32.totalorder %s997, 7
        %s999 = scalar_select %p998, %s997, 7
        %s1000 = smul.addr %s999, 8
        %s1001 = scalar_lea.vmem %s11, %s1000
      $region76: #{tpu_custom_call.1} parent=71 // pred_fallthru
        _
    $region72: #{tpu_custom_call.1} parent=5 // pred_fallthru
      _
  $region6: #{tpu_custom_call.1} parent=0 // loop_footer
    %s21 = sadd.s32 1, %s17
  $region7: #{tpu_custom_call.1} parent=0 // loop_footer_branch
    %16 = sbr.rel target = $region3
  $region8: #{tpu_custom_call.1} parent=0 // loop_exit
    _

</llo_original>
